<compile_context>
chip_gen: v5e
topology: v5e:2x2
jax: 0.10.0
libtpu: 0.0.40
codegen_flags: <defaults>
</compile_context>

<pallas_src>
import jax
import jax.numpy as jnp
import numpy as np
from jax.experimental import pallas as pl
from jax.experimental.pallas import tpu as pltpu

HID = 32        # hid_dim
N_NODES = 8     # number of nodes  (node_message rows, edge2tnode rows)
N_EDGES = 16    # number of edges  (theta / hidden / nb_matrix rows)


def _make_nedmp_kernel(N, E, H):
    """Kernel closure over the (static) graph sizes."""
    f32 = jnp.float32

    def kernel(act_ref, adj_ref, w_hp_ref, w_ha_ref, w_ms_ref, bias_ref, out_ref):
        relu = lambda x: jnp.maximum(x, 0.0)
        sig = jax.nn.sigmoid
        dot = lambda a, b: jnp.dot(a, b, preferred_element_type=f32)

        # ---- unpack activation slab (E, H+5) -------------------------------
        act = act_ref[...]
        h_prev = act[:, 0:H]                     # (E, H)
        th0 = act[:, H:H + 1]                    # theta columns (E, 1)
        th1 = act[:, H + 1:H + 2]
        th2 = act[:, H + 2:H + 3]
        e_msg = act[:, H + 3:H + 4]              # (E, 1)
        n_msg = act[0:N, H + 4:H + 5]            # (N, 1)

        # ---- unpack bias / row-vector slab (8, 4H) -------------------------
        bias = bias_ref[...]
        b_hp = bias[0:1, :]                      # [ch_b | bhh_r | bhh_z | bhh_n]
        b_ha = bias[1:2, :]                      # [bih_r | bih_z | bih_n | sd2_b pad]
        b_agg = bias[2:3, 0:2 * H]               # [a1_b | a2_b]
        te_b = bias[3:4, 0:H]
        m1_b = bias[3:4, H:2 * H]
        m2_b = bias[3:4, 2 * H:3 * H]
        sd1_b = bias[3:4, 3 * H:3 * H + 2]       # (1, 2)
        te_w0 = bias[4:5, 0:H]
        m1_w = bias[4:5, H:2 * H]
        m2_w = bias[4:5, 2 * H:3 * H]
        te_w1 = bias[5:6, 0:H]
        te_w2 = bias[6:7, 0:H]

        # ---- misc weight slab (H, 4H) --------------------------------------
        w_ms = w_ms_ref[...]
        ch_w2 = w_ms[:, 0:H]                     # (H, H)
        a_fused = w_ms[:, H:3 * H]               # [a1_w | a2_w]   (H, 2H)
        head_w = w_ms[:, 3 * H:3 * H + 6]        # [sd2_w2 | sd1_w1 | sd1_w2]

        # ---- embeddings on the VPU (no MXU, no tiny-K matmuls) -------------
        theta_emb = relu(th0 * te_w0 + th1 * te_w1 + th2 * te_w2 + te_b)   # (E, H)
        edge_msg = relu(e_msg * m2_w + m2_b)                               # (E, H)
        node_msg = relu(n_msg * m1_w + m1_b)                               # (N, H)

        # ---- fused h_prev matmul: [cat_hidden pre | GRU hh_r | hh_z | hh_n]
        hp = dot(h_prev, w_hp_ref[...]) + b_hp                             # (E, 4H)
        hh_r = hp[:, H:2 * H]
        hh_z = hp[:, 2 * H:3 * H]
        hh_n = hp[:, 3 * H:4 * H]

        # cat_hidden_layer(cat([h_prev, theta_emb], dim=1))
        hidden = relu(hp[:, 0:H] + dot(theta_emb, ch_w2))                  # (E, H)

        # ---- fused adjacency + aggregation ---------------------------------
        # adj = [edge2tnode ; nb_matrix] stacked along rows -> (N+E, E)
        mh = dot(adj_ref[...], hidden)                                     # (N+E, H)
        ag = dot(mh, a_fused) + b_agg                                      # (N+E, 2H)
        node_agg = relu(ag[0:N, 0:H])                                      # (N, H)
        hidden_agg = relu(ag[N:N + E, H:2 * H])                            # (E, H)

        # ---- fused hidden_agg matmul: [GRU ih_r | ih_z | ih_n | sd2_w1-part]
        ha = dot(hidden_agg, w_ha_ref[...]) + b_ha                         # (E, 4H)

        # GRUCell(hidden_agg, h_prev) — PyTorch gate order (r, z, n)
        r = sig(ha[:, 0:H] + hh_r)
        z = sig(ha[:, H:2 * H] + hh_z)
        n = jnp.tanh(ha[:, 2 * H:3 * H] + r * hh_n)
        h_new = (1.0 - z) * n + z * h_prev                                 # (E, H)

        # ---- output heads: one small fused matmul --------------------------
        heads_lhs = jnp.concatenate([node_agg, node_msg, edge_msg], axis=0)  # (2N+E, H)
        hd = dot(heads_lhs, head_w)                                          # (2N+E, 6)
        node_res = sig(hd[0:N, 2:4] + hd[N:2 * N, 4:6] + sd1_b)              # (N, 2)
        edge_res = sig(ha[:, 3 * H:3 * H + 2] + hd[2 * N:2 * N + E, 0:2])    # (E, 2)

        # ---- packed, lane-dense (E, 128) output block -----------------------
        out_ref[...] = jnp.zeros_like(out_ref)
        out_ref[:, 0:H] = h_new
        out_ref[:, H:H + 2] = edge_res
        out_ref[0:N, H + 2:H + 4] = node_res

    return kernel


def pack_params(p, H=HID):
    """Pack the ~30 per-layer parameter arrays into 4 VMEM-friendly slabs.

    Done once per layer (amortized over many forward calls / time steps).
    """
    cat = jnp.concatenate
    zrow = lambda w: jnp.zeros((1, w), jnp.float32)

    # (H, 4H): LHS = h_prev
    w_hp = cat([p["ch_w1"], p["whh_r"], p["whh_z"], p["whh_n"]], axis=1)
    # (H, 4H): LHS = hidden_agg  (sd2_w1 padded to a full H-lane block)
    w_ha = cat([p["wih_r"], p["wih_z"], p["wih_n"],
                jnp.pad(p["sd2_w1"], ((0, 0), (0, H - 2)))], axis=1)
    # (H, 4H): ch_w2 | a1_w | a2_w | sd2_w2 | sd1_w1 | sd1_w2 | pad
    w_ms = cat([p["ch_w2"], p["a1_w"], p["a2_w"],
                p["sd2_w2"], p["sd1_w1"], p["sd1_w2"],
                jnp.zeros((H, H - 6), jnp.float32)], axis=1)

    rows = [
        cat([p["ch_b"], p["bhh_r"], p["bhh_z"], p["bhh_n"]], axis=1),
        cat([p["bih_r"], p["bih_z"], p["bih_n"],
             jnp.pad(p["sd2_b"], ((0, 0), (0, H - 2)))], axis=1),
        cat([p["a1_b"], p["a2_b"], zrow(2 * H)], axis=1),
        cat([p["te_b"], p["m1_b"], p["m2_b"],
             jnp.pad(p["sd1_b"], ((0, 0), (0, H - 2)))], axis=1),
        cat([p["te_w"][0:1, :], p["m1_w"], p["m2_w"], zrow(H)], axis=1),
        cat([p["te_w"][1:2, :], zrow(3 * H)], axis=1),
        cat([p["te_w"][2:3, :], zrow(3 * H)], axis=1),
        zrow(4 * H),
    ]
    bias = cat(rows, axis=0)   # (8, 4H)
    return {"w_hp": w_hp, "w_ha": w_ha, "w_ms": w_ms, "bias": bias}


def nedmp_forward(theta, edge_message, node_message, nb_matrix, edge2tnode,
                  hidden, packed):
    """One NEDMP_layer.forward step. Returns (node_scale, node_delta,
    edge_scale, edge_delta, new_hidden)."""
    E, H = hidden.shape
    N = edge2tnode.shape[0]

    # Activation slab (E, H+5): [h_prev | theta(3) | edge_msg | node_msg(padded)]
    node_msg_pad = jnp.pad(node_message, (0, E - N))
    act = jnp.concatenate(
        [hidden, theta, edge_message[:, None], node_msg_pad[:, None]], axis=1)
    # Adjacency slab (N+E, E): [edge2tnode ; nb_matrix]
    adj = jnp.concatenate([edge2tnode, nb_matrix], axis=0)

    inputs = [act, adj, packed["w_hp"], packed["w_ha"], packed["w_ms"],
              packed["bias"]]

    def full_spec(shape):
        nd = len(shape)
        return pl.BlockSpec(shape, lambda i, _nd=nd: (0,) * _nd)

    out = pl.pallas_call(
        _make_nedmp_kernel(N, E, H),
        grid=(1,),
        in_specs=[full_spec(x.shape) for x in inputs],
        out_specs=full_spec((E, 128)),
        out_shape=jax.ShapeDtypeStruct((E, 128), jnp.float32),
        compiler_params=pltpu.CompilerParams(
            dimension_semantics=("arbitrary",)),
    )(*inputs)

    h_new = out[:, 0:H]
    edge_res = out[:, H:H + 2]
    node_res = out[0:N, H + 2:H + 4]
    return (node_res[:, 0], node_res[:, 1],
            edge_res[:, 0], edge_res[:, 1], h_new)


def reference(theta, edge_message, node_message, nb_matrix, edge2tnode, hidden, p):
    """Pure-JAX mirror of the PyTorch forward (concat form) for validation."""
    relu = lambda x: jnp.maximum(x, 0.0)
    sig = jax.nn.sigmoid
    theta_emb = relu(theta @ p["te_w"] + p["te_b"])
    node_msg = relu(node_message.reshape(-1, 1) @ p["m1_w"] + p["m1_b"])
    edge_msg = relu(edge_message.reshape(-1, 1) @ p["m2_w"] + p["m2_b"])
    ch_w = jnp.concatenate([p["ch_w1"], p["ch_w2"]], axis=0)
    hid = relu(jnp.concatenate([hidden, theta_emb], axis=1) @ ch_w + p["ch_b"])
    node_agg = relu((edge2tnode @ hid) @ p["a1_w"] + p["a1_b"])
    sd1_w = jnp.concatenate([p["sd1_w1"], p["sd1_w2"]], axis=0)
    node_res = sig(jnp.concatenate([node_agg, node_msg], axis=1) @ sd1_w + p["sd1_b"])
    hidden_agg = relu((nb_matrix @ hid) @ p["a2_w"] + p["a2_b"])
    r = sig(hidden_agg @ p["wih_r"] + p["bih_r"] + hidden @ p["whh_r"] + p["bhh_r"])
    z = sig(hidden_agg @ p["wih_z"] + p["bih_z"] + hidden @ p["whh_z"] + p["bhh_z"])
    n = jnp.tanh(hidden_agg @ p["wih_n"] + p["bih_n"]
                 + r * (hidden @ p["whh_n"] + p["bhh_n"]))
    h_new = (1.0 - z) * n + z * hidden
    sd2_w = jnp.concatenate([p["sd2_w1"], p["sd2_w2"]], axis=0)
    edge_res = sig(jnp.concatenate([hidden_agg, edge_msg], axis=1) @ sd2_w + p["sd2_b"])
    return node_res[:, 0], node_res[:, 1], edge_res[:, 0], edge_res[:, 1], h_new


def init_params(key, hid):
    shapes = {
        "te_w": (3, hid), "te_b": (1, hid),
        "m1_w": (1, hid), "m1_b": (1, hid),
        "m2_w": (1, hid), "m2_b": (1, hid),
        "ch_w1": (hid, hid), "ch_w2": (hid, hid), "ch_b": (1, hid),
        "a1_w": (hid, hid), "a1_b": (1, hid),
        "a2_w": (hid, hid), "a2_b": (1, hid),
        "sd1_w1": (hid, 2), "sd1_w2": (hid, 2), "sd1_b": (1, 2),
        "sd2_w1": (hid, 2), "sd2_w2": (hid, 2), "sd2_b": (1, 2),
        "wih_r": (hid, hid), "wih_z": (hid, hid), "wih_n": (hid, hid),
        "whh_r": (hid, hid), "whh_z": (hid, hid), "whh_n": (hid, hid),
        "bih_r": (1, hid), "bih_z": (1, hid), "bih_n": (1, hid),
        "bhh_r": (1, hid), "bhh_z": (1, hid), "bhh_n": (1, hid),
    }
    keys = jax.random.split(key, len(shapes))
    return {name: 0.2 * jax.random.normal(k, shp, jnp.float32)
            for (name, shp), k in zip(shapes.items(), keys)}


if __name__ == "__main__":
    key = jax.random.PRNGKey(0)
    k_theta, k_theta0, k_em, k_nm, k_nb, k_e2n, k_p = jax.random.split(key, 7)
    params = init_params(k_p, HID)
    packed = pack_params(params, HID)

    theta = jax.random.uniform(k_theta, (N_EDGES, 3), jnp.float32)
    theta0 = jax.random.uniform(k_theta0, (N_EDGES, 3), jnp.float32)
    edge_message = jax.random.uniform(k_em, (N_EDGES,), jnp.float32)
    node_message = jax.random.uniform(k_nm, (N_NODES,), jnp.float32)
    nb_matrix = (jax.random.uniform(k_nb, (N_EDGES, N_EDGES)) > 0.5).astype(jnp.float32)
    edge2tnode = (jax.random.uniform(k_e2n, (N_NODES, N_EDGES)) > 0.5).astype(jnp.float32)

    # module.init(theta0): self.hidden = theta_emb(theta0)  (plain-JAX glue)
    hidden0 = jnp.maximum(theta0 @ params["te_w"] + params["te_b"], 0.0)

    outs = nedmp_forward(theta, edge_message, node_message, nb_matrix,
                         edge2tnode, hidden0, packed)
    outs = jax.block_until_ready(outs)

    refs = reference(theta, edge_message, node_message, nb_matrix,
                     edge2tnode, hidden0, params)
    for o, r in zip(outs, refs):
        np.testing.assert_allclose(np.asarray(o), np.asarray(r), rtol=1e-5, atol=1e-5)

    print("KERNEL_OK")
</pallas_src>

<mosaic_0001>
module attributes {stable_mosaic.version = 11 : i64} {
  func.func @kernel(%arg0: i32, %arg1: memref<16x37xf32, #tpu.memory_space<vmem>>, %arg2: memref<24x16xf32, #tpu.memory_space<vmem>>, %arg3: memref<32x128xf32, #tpu.memory_space<vmem>>, %arg4: memref<32x128xf32, #tpu.memory_space<vmem>>, %arg5: memref<32x128xf32, #tpu.memory_space<vmem>>, %arg6: memref<8x128xf32, #tpu.memory_space<vmem>>, %arg7: memref<16x128xf32, #tpu.memory_space<vmem>>) attributes {dimension_semantics = [#tpu.dimension_semantics<arbitrary>], iteration_bounds = array<i64: 1>, scalar_prefetch = 0 : i64, scratch_operands = 0 : i64, tpu.core_type = #tpu.core_type<tc>, window_params = [{pipeline_mode = #tpu.pipeline_mode<synchronous>, transform_indices = @transform_0, window_bounds = array<i64: 16, 37>}, {pipeline_mode = #tpu.pipeline_mode<synchronous>, transform_indices = @transform_1, window_bounds = array<i64: 24, 16>}, {pipeline_mode = #tpu.pipeline_mode<synchronous>, transform_indices = @transform_2, window_bounds = array<i64: 32, 128>}, {pipeline_mode = #tpu.pipeline_mode<synchronous>, transform_indices = @transform_3, window_bounds = array<i64: 32, 128>}, {pipeline_mode = #tpu.pipeline_mode<synchronous>, transform_indices = @transform_4, window_bounds = array<i64: 32, 128>}, {pipeline_mode = #tpu.pipeline_mode<synchronous>, transform_indices = @transform_5, window_bounds = array<i64: 8, 128>}, {pipeline_mode = #tpu.pipeline_mode<synchronous>, transform_indices = @transform_6, window_bounds = array<i64: 16, 128>}]} {
    %c0 = arith.constant 0 : index
    %c0_0 = arith.constant 0 : index
    %0 = vector.load %arg1[%c0, %c0_0] : memref<16x37xf32, #tpu.memory_space<vmem>>, vector<16x37xf32>
    %1 = vector.extract_strided_slice %0 {offsets = [0, 0], sizes = [16, 32], strides = [1, 1]} : vector<16x37xf32> to vector<16x32xf32>
    %2 = vector.extract_strided_slice %0 {offsets = [0, 32], sizes = [16, 1], strides = [1, 1]} : vector<16x37xf32> to vector<16x1xf32>
    %3 = vector.extract_strided_slice %0 {offsets = [0, 33], sizes = [16, 1], strides = [1, 1]} : vector<16x37xf32> to vector<16x1xf32>
    %4 = vector.extract_strided_slice %0 {offsets = [0, 34], sizes = [16, 1], strides = [1, 1]} : vector<16x37xf32> to vector<16x1xf32>
    %5 = vector.extract_strided_slice %0 {offsets = [0, 35], sizes = [16, 1], strides = [1, 1]} : vector<16x37xf32> to vector<16x1xf32>
    %6 = vector.extract_strided_slice %0 {offsets = [0, 36], sizes = [8, 1], strides = [1, 1]} : vector<16x37xf32> to vector<8x1xf32>
    %c0_1 = arith.constant 0 : index
    %c0_2 = arith.constant 0 : index
    %7 = vector.load %arg6[%c0_1, %c0_2] : memref<8x128xf32, #tpu.memory_space<vmem>>, vector<8x128xf32>
    %8 = vector.extract_strided_slice %7 {offsets = [0, 0], sizes = [1, 128], strides = [1, 1]} : vector<8x128xf32> to vector<1x128xf32>
    %9 = vector.extract_strided_slice %7 {offsets = [1, 0], sizes = [1, 128], strides = [1, 1]} : vector<8x128xf32> to vector<1x128xf32>
    %10 = vector.extract_strided_slice %7 {offsets = [2, 0], sizes = [1, 64], strides = [1, 1]} : vector<8x128xf32> to vector<1x64xf32>
    %11 = vector.extract_strided_slice %7 {offsets = [3, 0], sizes = [1, 32], strides = [1, 1]} : vector<8x128xf32> to vector<1x32xf32>
    %12 = vector.extract_strided_slice %7 {offsets = [3, 32], sizes = [1, 32], strides = [1, 1]} : vector<8x128xf32> to vector<1x32xf32>
    %13 = vector.extract_strided_slice %7 {offsets = [3, 64], sizes = [1, 32], strides = [1, 1]} : vector<8x128xf32> to vector<1x32xf32>
    %14 = vector.extract_strided_slice %7 {offsets = [3, 96], sizes = [1, 2], strides = [1, 1]} : vector<8x128xf32> to vector<1x2xf32>
    %15 = vector.extract_strided_slice %7 {offsets = [4, 0], sizes = [1, 32], strides = [1, 1]} : vector<8x128xf32> to vector<1x32xf32>
    %16 = vector.extract_strided_slice %7 {offsets = [4, 32], sizes = [1, 32], strides = [1, 1]} : vector<8x128xf32> to vector<1x32xf32>
    %17 = vector.extract_strided_slice %7 {offsets = [4, 64], sizes = [1, 32], strides = [1, 1]} : vector<8x128xf32> to vector<1x32xf32>
    %18 = vector.extract_strided_slice %7 {offsets = [5, 0], sizes = [1, 32], strides = [1, 1]} : vector<8x128xf32> to vector<1x32xf32>
    %19 = vector.extract_strided_slice %7 {offsets = [6, 0], sizes = [1, 32], strides = [1, 1]} : vector<8x128xf32> to vector<1x32xf32>
    %c0_3 = arith.constant 0 : index
    %c0_4 = arith.constant 0 : index
    %20 = vector.load %arg5[%c0_3, %c0_4] : memref<32x128xf32, #tpu.memory_space<vmem>>, vector<32x128xf32>
    %21 = vector.extract_strided_slice %20 {offsets = [0, 0], sizes = [32, 32], strides = [1, 1]} : vector<32x128xf32> to vector<32x32xf32>
    %22 = vector.extract_strided_slice %20 {offsets = [0, 32], sizes = [32, 64], strides = [1, 1]} : vector<32x128xf32> to vector<32x64xf32>
    %23 = vector.extract_strided_slice %20 {offsets = [0, 96], sizes = [32, 6], strides = [1, 1]} : vector<32x128xf32> to vector<32x6xf32>
    %24 = vector.broadcast %2 : vector<16x1xf32> to vector<16x32xf32>
    %25 = vector.broadcast %15 : vector<1x32xf32> to vector<16x32xf32>
    %26 = arith.mulf %24, %25 : vector<16x32xf32>
    %27 = vector.broadcast %3 : vector<16x1xf32> to vector<16x32xf32>
    %28 = vector.broadcast %18 : vector<1x32xf32> to vector<16x32xf32>
    %29 = arith.mulf %27, %28 : vector<16x32xf32>
    %30 = arith.addf %26, %29 : vector<16x32xf32>
    %31 = vector.broadcast %4 : vector<16x1xf32> to vector<16x32xf32>
    %32 = vector.broadcast %19 : vector<1x32xf32> to vector<16x32xf32>
    %33 = arith.mulf %31, %32 : vector<16x32xf32>
    %34 = arith.addf %30, %33 : vector<16x32xf32>
    %35 = vector.broadcast %11 : vector<1x32xf32> to vector<16x32xf32>
    %36 = arith.addf %34, %35 : vector<16x32xf32>
    %cst = arith.constant 0.000000e+00 : f32
    %37 = vector.broadcast %cst : f32 to vector<16x32xf32>
    %38 = arith.maximumf %36, %37 : vector<16x32xf32>
    %39 = vector.broadcast %5 : vector<16x1xf32> to vector<16x32xf32>
    %40 = vector.broadcast %17 : vector<1x32xf32> to vector<16x32xf32>
    %41 = arith.mulf %39, %40 : vector<16x32xf32>
    %42 = vector.broadcast %13 : vector<1x32xf32> to vector<16x32xf32>
    %43 = arith.addf %41, %42 : vector<16x32xf32>
    %cst_5 = arith.constant 0.000000e+00 : f32
    %44 = vector.broadcast %cst_5 : f32 to vector<16x32xf32>
    %45 = arith.maximumf %43, %44 : vector<16x32xf32>
    %46 = vector.broadcast %6 : vector<8x1xf32> to vector<8x32xf32>
    %47 = vector.broadcast %16 : vector<1x32xf32> to vector<8x32xf32>
    %48 = arith.mulf %46, %47 : vector<8x32xf32>
    %49 = vector.broadcast %12 : vector<1x32xf32> to vector<8x32xf32>
    %50 = arith.addf %48, %49 : vector<8x32xf32>
    %cst_6 = arith.constant 0.000000e+00 : f32
    %51 = vector.broadcast %cst_6 : f32 to vector<8x32xf32>
    %52 = arith.maximumf %50, %51 : vector<8x32xf32>
    %c0_7 = arith.constant 0 : index
    %c0_8 = arith.constant 0 : index
    %53 = vector.load %arg3[%c0_7, %c0_8] : memref<32x128xf32, #tpu.memory_space<vmem>>, vector<32x128xf32>
    %cst_9 = arith.constant dense<0.000000e+00> : vector<16x128xf32>
    %54 = tpu.matmul %1, %53, %cst_9 {dimension_numbers = #tpu.dot_dimension_numbers<[1], [0], [0], [1], [0, 0, 1, 1], [], []>} : vector<16x32xf32>, vector<32x128xf32>, vector<16x128xf32> -> vector<16x128xf32>
    %55 = vector.broadcast %8 : vector<1x128xf32> to vector<16x128xf32>
    %56 = arith.addf %54, %55 : vector<16x128xf32>
    %57 = vector.extract_strided_slice %56 {offsets = [0, 32], sizes = [16, 32], strides = [1, 1]} : vector<16x128xf32> to vector<16x32xf32>
    %58 = vector.extract_strided_slice %56 {offsets = [0, 64], sizes = [16, 32], strides = [1, 1]} : vector<16x128xf32> to vector<16x32xf32>
    %59 = vector.extract_strided_slice %56 {offsets = [0, 96], sizes = [16, 32], strides = [1, 1]} : vector<16x128xf32> to vector<16x32xf32>
    %60 = vector.extract_strided_slice %56 {offsets = [0, 0], sizes = [16, 32], strides = [1, 1]} : vector<16x128xf32> to vector<16x32xf32>
    %cst_10 = arith.constant dense<0.000000e+00> : vector<16x32xf32>
    %61 = tpu.matmul %38, %21, %cst_10 {dimension_numbers = #tpu.dot_dimension_numbers<[1], [0], [0], [1], [0, 0, 1, 1], [], []>} : vector<16x32xf32>, vector<32x32xf32>, vector<16x32xf32> -> vector<16x32xf32>
    %62 = arith.addf %60, %61 : vector<16x32xf32>
    %cst_11 = arith.constant 0.000000e+00 : f32
    %63 = vector.broadcast %cst_11 : f32 to vector<16x32xf32>
    %64 = arith.maximumf %62, %63 : vector<16x32xf32>
    %c0_12 = arith.constant 0 : index
    %c0_13 = arith.constant 0 : index
    %65 = vector.load %arg2[%c0_12, %c0_13] : memref<24x16xf32, #tpu.memory_space<vmem>>, vector<24x16xf32>
    %cst_14 = arith.constant dense<0.000000e+00> : vector<24x32xf32>
    %66 = tpu.matmul %65, %64, %cst_14 {dimension_numbers = #tpu.dot_dimension_numbers<[1], [0], [0], [1], [0, 0, 1, 1], [], []>} : vector<24x16xf32>, vector<16x32xf32>, vector<24x32xf32> -> vector<24x32xf32>
    %cst_15 = arith.constant dense<0.000000e+00> : vector<24x64xf32>
    %67 = tpu.matmul %66, %22, %cst_15 {dimension_numbers = #tpu.dot_dimension_numbers<[1], [0], [0], [1], [0, 0, 1, 1], [], []>} : vector<24x32xf32>, vector<32x64xf32>, vector<24x64xf32> -> vector<24x64xf32>
    %68 = vector.broadcast %10 : vector<1x64xf32> to vector<24x64xf32>
    %69 = arith.addf %67, %68 : vector<24x64xf32>
    %70 = vector.extract_strided_slice %69 {offsets = [0, 0], sizes = [8, 32], strides = [1, 1]} : vector<24x64xf32> to vector<8x32xf32>
    %cst_16 = arith.constant 0.000000e+00 : f32
    %71 = vector.broadcast %cst_16 : f32 to vector<8x32xf32>
    %72 = arith.maximumf %70, %71 : vector<8x32xf32>
    %73 = vector.extract_strided_slice %69 {offsets = [8, 32], sizes = [16, 32], strides = [1, 1]} : vector<24x64xf32> to vector<16x32xf32>
    %cst_17 = arith.constant 0.000000e+00 : f32
    %74 = vector.broadcast %cst_17 : f32 to vector<16x32xf32>
    %75 = arith.maximumf %73, %74 : vector<16x32xf32>
    %c0_18 = arith.constant 0 : index
    %c0_19 = arith.constant 0 : index
    %76 = vector.load %arg4[%c0_18, %c0_19] : memref<32x128xf32, #tpu.memory_space<vmem>>, vector<32x128xf32>
    %cst_20 = arith.constant dense<0.000000e+00> : vector<16x128xf32>
    %77 = tpu.matmul %75, %76, %cst_20 {dimension_numbers = #tpu.dot_dimension_numbers<[1], [0], [0], [1], [0, 0, 1, 1], [], []>} : vector<16x32xf32>, vector<32x128xf32>, vector<16x128xf32> -> vector<16x128xf32>
    %78 = vector.broadcast %9 : vector<1x128xf32> to vector<16x128xf32>
    %79 = arith.addf %77, %78 : vector<16x128xf32>
    %80 = vector.extract_strided_slice %79 {offsets = [0, 0], sizes = [16, 32], strides = [1, 1]} : vector<16x128xf32> to vector<16x32xf32>
    %81 = arith.addf %80, %57 : vector<16x32xf32>
    %82 = arith.negf %81 : vector<16x32xf32>
    %83 = math.exp %82 : vector<16x32xf32>
    %cst_21 = arith.constant 1.000000e+00 : f32
    %84 = vector.broadcast %cst_21 : f32 to vector<16x32xf32>
    %85 = arith.addf %84, %83 : vector<16x32xf32>
    %86 = arith.divf %84, %85 : vector<16x32xf32>
    %87 = vector.extract_strided_slice %79 {offsets = [0, 32], sizes = [16, 32], strides = [1, 1]} : vector<16x128xf32> to vector<16x32xf32>
    %88 = arith.addf %87, %58 : vector<16x32xf32>
    %89 = arith.negf %88 : vector<16x32xf32>
    %90 = math.exp %89 : vector<16x32xf32>
    %cst_22 = arith.constant 1.000000e+00 : f32
    %91 = vector.broadcast %cst_22 : f32 to vector<16x32xf32>
    %92 = arith.addf %91, %90 : vector<16x32xf32>
    %93 = arith.divf %91, %92 : vector<16x32xf32>
    %94 = vector.extract_strided_slice %79 {offsets = [0, 64], sizes = [16, 32], strides = [1, 1]} : vector<16x128xf32> to vector<16x32xf32>
    %95 = arith.mulf %86, %59 : vector<16x32xf32>
    %96 = arith.addf %94, %95 : vector<16x32xf32>
    %97 = math.tanh %96 : vector<16x32xf32>
    %cst_23 = arith.constant 1.000000e+00 : f32
    %98 = vector.broadcast %cst_23 : f32 to vector<16x32xf32>
    %99 = arith.subf %98, %93 : vector<16x32xf32>
    %100 = arith.mulf %99, %97 : vector<16x32xf32>
    %101 = arith.mulf %93, %1 : vector<16x32xf32>
    %102 = arith.addf %100, %101 : vector<16x32xf32>
    %103 = tpu.concatenate %72, %52, %45 in 0 : vector<8x32xf32>, vector<8x32xf32>, vector<16x32xf32> -> vector<32x32xf32>
    %cst_24 = arith.constant dense<0.000000e+00> : vector<32x6xf32>
    %104 = tpu.matmul %103, %23, %cst_24 {dimension_numbers = #tpu.dot_dimension_numbers<[1], [0], [0], [1], [0, 0, 1, 1], [], []>} : vector<32x32xf32>, vector<32x6xf32>, vector<32x6xf32> -> vector<32x6xf32>
    %105 = vector.extract_strided_slice %104 {offsets = [0, 2], sizes = [8, 2], strides = [1, 1]} : vector<32x6xf32> to vector<8x2xf32>
    %106 = vector.extract_strided_slice %104 {offsets = [8, 4], sizes = [8, 2], strides = [1, 1]} : vector<32x6xf32> to vector<8x2xf32>
    %107 = arith.addf %105, %106 : vector<8x2xf32>
    %108 = vector.broadcast %14 : vector<1x2xf32> to vector<8x2xf32>
    %109 = arith.addf %107, %108 : vector<8x2xf32>
    %110 = arith.negf %109 : vector<8x2xf32>
    %111 = math.exp %110 : vector<8x2xf32>
    %cst_25 = arith.constant 1.000000e+00 : f32
    %112 = vector.broadcast %cst_25 : f32 to vector<8x2xf32>
    %113 = arith.addf %112, %111 : vector<8x2xf32>
    %114 = arith.divf %112, %113 : vector<8x2xf32>
    %115 = vector.extract_strided_slice %79 {offsets = [0, 96], sizes = [16, 2], strides = [1, 1]} : vector<16x128xf32> to vector<16x2xf32>
    %116 = vector.extract_strided_slice %104 {offsets = [16, 0], sizes = [16, 2], strides = [1, 1]} : vector<32x6xf32> to vector<16x2xf32>
    %117 = arith.addf %115, %116 : vector<16x2xf32>
    %118 = arith.negf %117 : vector<16x2xf32>
    %119 = math.exp %118 : vector<16x2xf32>
    %cst_26 = arith.constant 1.000000e+00 : f32
    %120 = vector.broadcast %cst_26 : f32 to vector<16x2xf32>
    %121 = arith.addf %120, %119 : vector<16x2xf32>
    %122 = arith.divf %120, %121 : vector<16x2xf32>
    %cst_27 = arith.constant 0.000000e+00 : f32
    %123 = vector.broadcast %cst_27 : f32 to vector<16x128xf32>
    %c0_28 = arith.constant 0 : index
    %c0_29 = arith.constant 0 : index
    %124 = vector.load %arg7[%c0_28, %c0_29] : memref<16x128xf32, #tpu.memory_space<vmem>>, vector<16x128xf32>
    tpu.vector_store %arg7[%c0_28, %c0_29], %123 {strides = array<i32>} : memref<16x128xf32, #tpu.memory_space<vmem>>, vector<16x128xf32>,
    %c0_30 = arith.constant 0 : index
    %c0_31 = arith.constant 0 : index
    %125 = vector.load %arg7[%c0_30, %c0_31] : memref<16x128xf32, #tpu.memory_space<vmem>>, vector<16x32xf32>
    tpu.vector_store %arg7[%c0_30, %c0_31], %102 {strides = array<i32>} : memref<16x128xf32, #tpu.memory_space<vmem>>, vector<16x32xf32>,
    %c0_32 = arith.constant 0 : index
    %c32 = arith.constant 32 : index
    %126 = vector.load %arg7[%c0_32, %c32] : memref<16x128xf32, #tpu.memory_space<vmem>>, vector<16x2xf32>
    tpu.vector_store %arg7[%c0_32, %c32], %122 {strides = array<i32>} : memref<16x128xf32, #tpu.memory_space<vmem>>, vector<16x2xf32>,
    %c0_33 = arith.constant 0 : index
    %c34 = arith.constant 34 : index
    %127 = vector.load %arg7[%c0_33, %c34] : memref<16x128xf32, #tpu.memory_space<vmem>>, vector<8x2xf32>
    tpu.vector_store %arg7[%c0_33, %c34], %114 {strides = array<i32>} : memref<16x128xf32, #tpu.memory_space<vmem>>, vector<8x2xf32>,
    return
  }
  func.func @transform_0(%arg0: i32) -> (i32, i32) {
    %c0_i32 = arith.constant 0 : i32
    %c0_i32_0 = arith.constant 0 : i32
    %c0_i32_1 = arith.constant 0 : i32
    return %c0_i32, %c0_i32_0 : i32, i32
  }
  func.func @transform_1(%arg0: i32) -> (i32, i32) {
    %c0_i32 = arith.constant 0 : i32
    %c0_i32_0 = arith.constant 0 : i32
    %c0_i32_1 = arith.constant 0 : i32
    return %c0_i32, %c0_i32_0 : i32, i32
  }
  func.func @transform_2(%arg0: i32) -> (i32, i32) {
    %c0_i32 = arith.constant 0 : i32
    %c0_i32_0 = arith.constant 0 : i32
    %c0_i32_1 = arith.constant 0 : i32
    return %c0_i32, %c0_i32_0 : i32, i32
  }
  func.func @transform_3(%arg0: i32) -> (i32, i32) {
    %c0_i32 = arith.constant 0 : i32
    %c0_i32_0 = arith.constant 0 : i32
    %c0_i32_1 = arith.constant 0 : i32
    return %c0_i32, %c0_i32_0 : i32, i32
  }
  func.func @transform_4(%arg0: i32) -> (i32, i32) {
    %c0_i32 = arith.constant 0 : i32
    %c0_i32_0 = arith.constant 0 : i32
    %c0_i32_1 = arith.constant 0 : i32
    return %c0_i32, %c0_i32_0 : i32, i32
  }
  func.func @transform_5(%arg0: i32) -> (i32, i32) {
    %c0_i32 = arith.constant 0 : i32
    %c0_i32_0 = arith.constant 0 : i32
    %c0_i32_1 = arith.constant 0 : i32
    return %c0_i32, %c0_i32_0 : i32, i32
  }
  func.func @transform_6(%arg0: i32) -> (i32, i32) {
    %c0_i32 = arith.constant 0 : i32
    %c0_i32_0 = arith.constant 0 : i32
    %c0_i32_1 = arith.constant 0 : i32
    return %c0_i32, %c0_i32_0 : i32, i32
  }
}

</mosaic_0001>

<llo_original>
// kernel: tpu_custom_call.1
$region0: #{tpu_custom_call.1}
  #allocation0 [shape = 'u32[]', space=smem, size = 0x4, offset = 0x4, fixed_abs, tag = 'smem constant byte address 0x4 - core index']
  #allocation1 [shape = 'u32[72,128]{1,0:T(1,128)}', space=vmem, size = 0x9000, scoped, tag = 'internal scratch']
  %s0 = inlined_call_operand.hbm [shape: f32[16,37], index: 0, kind: input, shape index: {}]
  %s1 = inlined_call_operand.vmem [shape: f32[24,16], index: 1, kind: input, shape index: {}]
  %s2 = inlined_call_operand.vmem [shape: f32[32,128], index: 2, kind: input, shape index: {}]
  %s3 = inlined_call_operand.hbm [shape: f32[32,128], index: 3, kind: input, shape index: {}]
  %s4 = inlined_call_operand.hbm [shape: f32[32,128], index: 4, kind: input, shape index: {}]
  %s5 = inlined_call_operand.vmem [shape: f32[8,128], index: 5, kind: input, shape index: {}]
  %s6 = inlined_call_operand.hbm [shape: f32[16,128], index: 6, kind: output, shape index: {}]
  %s7 = sld [smem:[#allocation0]]
  $region46: #{tpu_custom_call.1} parent=0
    _
  %s9 = ssub.s32 1, %s7
  %s10 = scalar_select 0, %s9, %s7
  $region1: #{tpu_custom_call.1} parent=0
    #allocation2 [shape = 'u8[8192]{0}', space=vmem, size = 0x2000, scoped, tag = 'input window, operand 0, single buffered']
    #allocation3 [shape = 's32[1]{0}', space=sflag, size = 0x4, scoped, tag = 'scoped memory for tpu_custom_call.1']
    #allocation4 [shape = 's32[1]{0}', space=sflag, size = 0x4, scoped, tag = 'scoped memory for tpu_custom_call.1']
    #allocation5 [shape = 'u8[16384]{0}', space=vmem, size = 0x4000, scoped, tag = 'input window, operand 3, single buffered']
    #allocation6 [shape = 's32[1]{0}', space=sflag, size = 0x4, scoped, tag = 'scoped memory for tpu_custom_call.1']
    #allocation7 [shape = 'u8[16384]{0}', space=vmem, size = 0x4000, scoped, tag = 'input window, operand 4, single buffered']
    #allocation8 [shape = 'u8[8192]{0}', space=vmem, size = 0x2000, scoped, tag = 'output window, operand 0, single buffered']
    %11 = vsyncpa [#allocation3], 0
    %12 = vsyncpa [#allocation6], 0
    %13 = vsyncpa [#allocation4], 0
    // Predicated region
    $region2: #{tpu_custom_call.1} parent=1 // pred_check
      _
    $region3: #{tpu_custom_call.1} parent=1 // pred_check_branch
      %15 = sbr.rel (0) target = $region5
    $region4: #{tpu_custom_call.1} parent=1 // pred_region
      %17 = vsyncadd [#allocation3], 0
      %s18 = sshll.u32 %s0, 4
      %s19 = int_to_ptr.hbm [resolvable:$true] %s18
      %s20 = sshll.u32 [#allocation2], 4
      %s21 = int_to_ptr.vmem [resolvable:$true] %s20
      %26 = dma.hbm_to_vmem [thread:$0]  %s19, 256, %s21, [#allocation3], 128, 128, 8
    $region5: #{tpu_custom_call.1} parent=1 // pred_fallthru
      _
    // Predicated region
    $region6: #{tpu_custom_call.1} parent=1 // pred_check
      _
    $region7: #{tpu_custom_call.1} parent=1 // pred_check_branch
      %28 = sbr.rel (0) target = $region9
    $region8: #{tpu_custom_call.1} parent=1 // pred_region
      _
    $region9: #{tpu_custom_call.1} parent=1 // pred_fallthru
      _
    // Predicated region
    $region10: #{tpu_custom_call.1} parent=1 // pred_check
      _
    $region11: #{tpu_custom_call.1} parent=1 // pred_check_branch
      %30 = sbr.rel (0) target = $region13
    $region12: #{tpu_custom_call.1} parent=1 // pred_region
      _
    $region13: #{tpu_custom_call.1} parent=1 // pred_fallthru
      _
    // Predicated region
    $region14: #{tpu_custom_call.1} parent=1 // pred_check
      _
    $region15: #{tpu_custom_call.1} parent=1 // pred_check_branch
      %32 = sbr.rel (0) target = $region17
    $region16: #{tpu_custom_call.1} parent=1 // pred_region
      %34 = vsyncadd [#allocation6], 0
      %s35 = sshll.u32 %s3, 4
      %s36 = int_to_ptr.hbm [resolvable:$true] %s35
      %s37 = sshll.u32 [#allocation5], 4
      %s38 = int_to_ptr.vmem [resolvable:$true] %s37
      %43 = dma.hbm_to_vmem [thread:$0]  %s36, 512, %s38, [#allocation6], 128, 128, 8
    $region17: #{tpu_custom_call.1} parent=1 // pred_fallthru
      _
    // Predicated region
    $region18: #{tpu_custom_call.1} parent=1 // pred_check
      _
    $region19: #{tpu_custom_call.1} parent=1 // pred_check_branch
      %45 = sbr.rel (0) target = $region21
    $region20: #{tpu_custom_call.1} parent=1 // pred_region
      %47 = vsyncadd [#allocation6], 0
      %s48 = sshll.u32 %s4, 4
      %s49 = int_to_ptr.hbm [resolvable:$true] %s48
      %s50 = sshll.u32 [#allocation7], 4
      %s51 = int_to_ptr.vmem [resolvable:$true] %s50
      %56 = dma.hbm_to_vmem [thread:$0]  %s49, 512, %s51, [#allocation6], 128, 128, 8
    $region21: #{tpu_custom_call.1} parent=1 // pred_fallthru
      _
    // Predicated region
    $region22: #{tpu_custom_call.1} parent=1 // pred_check
      _
    $region23: #{tpu_custom_call.1} parent=1 // pred_check_branch
      %58 = sbr.rel (0) target = $region25
    $region24: #{tpu_custom_call.1} parent=1 // pred_region
      _
    $region25: #{tpu_custom_call.1} parent=1 // pred_fallthru
      _
    // Predicated region
    $region26: #{tpu_custom_call.1} parent=1 // pred_check
      _
    $region27: #{tpu_custom_call.1} parent=1 // pred_check_branch
      %60 = sbr.rel (0) target = $region29
    $region28: #{tpu_custom_call.1} parent=1 // pred_region
      %62 = dma.done [#allocation3], 256
    $region29: #{tpu_custom_call.1} parent=1 // pred_fallthru
      _
    // Predicated region
    $region30: #{tpu_custom_call.1} parent=1 // pred_check
      _
    $region31: #{tpu_custom_call.1} parent=1 // pred_check_branch
      %64 = sbr.rel (0) target = $region33
    $region32: #{tpu_custom_call.1} parent=1 // pred_region
      %66 = dma.done [#allocation6], 512
    $region33: #{tpu_custom_call.1} parent=1 // pred_fallthru
      _
    // Predicated region
    $region34: #{tpu_custom_call.1} parent=1 // pred_check
      _
    $region35: #{tpu_custom_call.1} parent=1 // pred_check_branch
      %68 = sbr.rel (0) target = $region37
    $region36: #{tpu_custom_call.1} parent=1 // pred_region
      %70 = dma.done [#allocation6], 512
    $region37: #{tpu_custom_call.1} parent=1 // pred_fallthru
      _
    %v71 = vld [vmem:[#allocation2] sm:$0xff]
    %v72 = vld [vmem:[#allocation2 + $0x8] sm:$0xff]
    %v73 = vld [vmem:[%s5] sm:$0xff]
    %v74 = vld [vmem:[#allocation7] sm:$0xff]
    %v75 = vld [vmem:[#allocation7 + $0x8] sm:$0xff]
    %v76 = vld [vmem:[#allocation7 + $0x10] sm:$0xff]
    %v77 = vld [vmem:[#allocation7 + $0x18] sm:$0xff]
    %79 = vset.pattern.permute.xlu0 32
    %80 = vperm.xlu0 %79, %v71
    %v81 = vpop.permute.xlu0 %80
    %84 = vset.pattern.permute.xlu0 32
    %85 = vperm.xlu0 %84, %v72
    %v86 = vpop.permute.xlu0 %85
    %v88 = vperm.slane %v73, 4
    %v89 = vmul.f32 %v81, %v88
    %v90 = vmul.f32 %v86, %v88
    %91 = vset.pattern.permute.xlu0 33
    %92 = vperm.xlu0 %91, %v71
    %v93 = vpop.permute.xlu0 %92
    %95 = vset.pattern.permute.xlu0 33
    %96 = vperm.xlu0 %95, %v72
    %v97 = vpop.permute.xlu0 %96
    %v99 = vperm.slane %v73, 5
    %v100 = vmul.f32 %v93, %v99
    %v101 = vmul.f32 %v97, %v99
    %v102 = vadd.f32 %v89, %v100
    %v103 = vadd.f32 %v90, %v101
    %104 = vset.pattern.permute.xlu0 34
    %105 = vperm.xlu0 %104, %v71
    %v106 = vpop.permute.xlu0 %105
    %108 = vset.pattern.permute.xlu0 34
    %109 = vperm.xlu0 %108, %v72
    %v110 = vpop.permute.xlu0 %109
    %v112 = vperm.slane %v73, 6
    %v113 = vmul.f32 %v106, %v112
    %v114 = vmul.f32 %v110, %v112
    %v115 = vadd.f32 %v102, %v113
    %v116 = vadd.f32 %v103, %v114
    %v117 = vperm.slane %v73, 3
    %v118 = vadd.f32 %v115, %v117
    %v119 = vadd.f32 %v116, %v117
    %v120 = vmax.f32 %v118, 0.0
    %v121 = vmax.f32 %v119, 0.0
    %122 = vset.pattern.permute.xlu0 35
    %123 = vperm.xlu0 %122, %v71
    %v124 = vpop.permute.xlu0 %123
    %126 = vset.pattern.permute.xlu0 35
    %127 = vperm.xlu0 %126, %v72
    %v128 = vpop.permute.xlu0 %127
    %v130 = vmul.f32 %v124, %v88
    %v131 = vmul.f32 %v128, %v88
    %v132 = vadd.f32 %v130, %v117
    %v133 = vadd.f32 %v131, %v117
    %v134 = vmax.f32 %v132, 0.0
    %v135 = vmax.f32 %v133, 0.0
    %136 = vset.pattern.permute.xlu0 36
    %137 = vperm.xlu0 %136, %v71
    %v138 = vpop.permute.xlu0 %137
    %v140 = vmul.f32 %v138, %v88
    %v141 = vadd.f32 %v140, %v117
    %v142 = vmax.f32 %v141, 0.0
    %v143 = vld [vmem:[%s2] sm:$0xff]
    %v144 = vld [vmem:[%s2 + $0x8] sm:$0xff]
    %v145 = vld [vmem:[%s2 + $0x10] sm:$0xff]
    %v146 = vld [vmem:[%s2 + $0x18] sm:$0xff]
    %v147 = vperm.slane %v73, 0
    %vm148 = vcmask 261120
    %v149 = vsel %vm148, %v71, 0
    %v151 = vsel %vm148, %v72, 0
    %153 = vmatpush.msra.mxu0 0.0
    %154 = vmatpush.msra.mxu0 0.0
    %155 = vmatpush.msra.mxu0 0.0
    %156 = vmatpush.msra.mxu0 0.0
    %157 = vmatpush.msra.mxu0 0.0
    %158 = vmatpush.msra.mxu0 0.0
    %159 = vmatpush.msra.mxu0 0.0
    %160 = vmatpush.msra.mxu0 0.0
    %161 = vmatpush.msra.mxu0 0.0
    %162 = vmatpush.msra.mxu0 0.0
    %163 = vmatpush.msra.mxu0 0.0
    %164 = vmatpush.msra.mxu0 0.0
    %165 = vmatpush.msra.mxu0 %v146
    %166 = vmatpush.msra.mxu0 %v145
    %167 = vmatpush.msra.mxu0 %v144
    %168 = vmatpush.msra.mxu0 %v143
    %169 = vmatmul.f32.gmra.mxu0 %v149
    %v170 = vpop.f32.mrf.mxu0
    %v171 = vadd.f32 %v147, %v170
    %172 = vmatmul.f32.gmra.mxu0 %v151
    %v173 = vpop.f32.mrf.mxu0
    %v174 = vadd.f32 %v147, %v173
    %175 = vdwg.mxu0
    %v177 = vsel %vm148, %v120, 0
    %v180 = vsel %vm148, %v121, 0
    %182 = vmatpush.msra.mxu0 0.0
    %183 = vmatpush.msra.mxu0 0.0
    %184 = vmatpush.msra.mxu0 0.0
    %185 = vmatpush.msra.mxu0 0.0
    %186 = vmatpush.msra.mxu0 0.0
    %187 = vmatpush.msra.mxu0 0.0
    %188 = vmatpush.msra.mxu0 0.0
    %189 = vmatpush.msra.mxu0 0.0
    %190 = vmatpush.msra.mxu0 0.0
    %191 = vmatpush.msra.mxu0 0.0
    %192 = vmatpush.msra.mxu0 0.0
    %193 = vmatpush.msra.mxu0 0.0
    %194 = vmatpush.msra.mxu0 %v77
    %195 = vmatpush.msra.mxu0 %v76
    %196 = vmatpush.msra.mxu0 %v75
    %197 = vmatpush.msra.mxu0 %v74
    %198 = vmatmul.f32.gmra.mxu0 %v177
    %v199 = vpop.f32.mrf.mxu0
    %v200 = vadd.f32 0.0, %v199
    %201 = vmatmul.f32.gmra.mxu0 %v180
    %v202 = vpop.f32.mrf.mxu0
    %v203 = vadd.f32 0.0, %v202
    %204 = vdwg.mxu0
    %v205 = vadd.f32 %v171, %v200
    %v206 = vadd.f32 %v174, %v203
    %v207 = vmax.f32 %v205, 0.0
    %v208 = vmax.f32 %v206, 0.0
    %v209 = vld [vmem:[%s1] sm:$0xff]
    %v210 = vld [vmem:[%s1 + $0x8] sm:$0xff]
    %v211 = vld [vmem:[%s1 + $0x10] sm:$0xff]
    %vm212 = vcmask 130048
    %v214 = vsel %vm212, %v209, 0
    %v217 = vsel %vm212, %v210, 0
    %v220 = vsel %vm212, %v211, 0
    %222 = vmatpush.msra.mxu0 0.0
    %223 = vmatpush.msra.mxu0 0.0
    %224 = vmatpush.msra.mxu0 0.0
    %225 = vmatpush.msra.mxu0 0.0
    %226 = vmatpush.msra.mxu0 0.0
    %227 = vmatpush.msra.mxu0 0.0
    %228 = vmatpush.msra.mxu0 0.0
    %229 = vmatpush.msra.mxu0 0.0
    %230 = vmatpush.msra.mxu0 0.0
    %231 = vmatpush.msra.mxu0 0.0
    %232 = vmatpush.msra.mxu0 0.0
    %233 = vmatpush.msra.mxu0 0.0
    %234 = vmatpush.msra.mxu0 0.0
    %235 = vmatpush.msra.mxu0 0.0
    %236 = vmatpush.msra.mxu0 %v208
    %237 = vmatpush.msra.mxu0 %v207
    %238 = vmatmul.f32.gmra.mxu0 %v214
    %v239 = vpop.f32.mrf.mxu0
    %v240 = vadd.f32 0.0, %v239
    %241 = vmatmul.f32.gmra.mxu0 %v217
    %v242 = vpop.f32.mrf.mxu0
    %v243 = vadd.f32 0.0, %v242
    %244 = vmatmul.f32.gmra.mxu0 %v220
    %v245 = vpop.f32.mrf.mxu0
    %v246 = vadd.f32 0.0, %v245
    %247 = vdwg.mxu0
    %v248 = vperm.slane %v73, 2
    %253 = vrot.lane.b32.xlu0 %v74, 96
    %v254 = vpop.permute.xlu0 %253
    %255 = vrot.lane.b32.xlu0 %v75, 96
    %v256 = vpop.permute.xlu0 %255
    %257 = vrot.lane.b32.xlu0 %v76, 96
    %v258 = vpop.permute.xlu0 %257
    %259 = vrot.lane.b32.xlu0 %v77, 96
    %v260 = vpop.permute.xlu0 %259
    %v266 = vsel %vm148, %v240, 0
    %v269 = vsel %vm148, %v243, 0
    %v272 = vsel %vm148, %v246, 0
    %274 = vmatpush.msra.mxu0 0.0
    %275 = vmatpush.msra.mxu0 0.0
    %276 = vmatpush.msra.mxu0 0.0
    %277 = vmatpush.msra.mxu0 0.0
    %278 = vmatpush.msra.mxu0 0.0
    %279 = vmatpush.msra.mxu0 0.0
    %280 = vmatpush.msra.mxu0 0.0
    %281 = vmatpush.msra.mxu0 0.0
    %282 = vmatpush.msra.mxu0 0.0
    %283 = vmatpush.msra.mxu0 0.0
    %284 = vmatpush.msra.mxu0 0.0
    %285 = vmatpush.msra.mxu0 0.0
    %286 = vmatpush.msra.mxu0 %v260
    %287 = vmatpush.msra.mxu0 %v258
    %288 = vmatpush.msra.mxu0 %v256
    %289 = vmatpush.msra.mxu0 %v254
    %290 = vmatmul.f32.gmra.mxu0 %v266
    %v291 = vpop.f32.mrf.mxu0
    %v292 = vadd.f32 %v248, %v291
    %293 = vmatmul.f32.gmra.mxu0 %v269
    %v294 = vpop.f32.mrf.mxu0
    %v295 = vadd.f32 %v248, %v294
    %296 = vmatmul.f32.gmra.mxu0 %v272
    %v297 = vpop.f32.mrf.mxu0
    %v298 = vadd.f32 %v248, %v297
    %299 = vdwg.mxu0
    %v300 = vmax.f32 %v292, 0.0
    %v301 = vmax.f32 %v295, 0.0
    %v302 = vmax.f32 %v298, 0.0
    %v303 = vld [vmem:[#allocation5] sm:$0xff]
    %v304 = vld [vmem:[#allocation5 + $0x8] sm:$0xff]
    %v305 = vld [vmem:[#allocation5 + $0x10] sm:$0xff]
    %v306 = vld [vmem:[#allocation5 + $0x18] sm:$0xff]
    %v307 = vperm.slane %v73, 1
    %310 = vrot.lane.b32.xlu0 %v301, 96
    %v311 = vpop.permute.xlu0 %310
    %312 = vrot.lane.b32.xlu0 %v302, 96
    %v313 = vpop.permute.xlu0 %312
    %v314 = vsel %vm148, %v311, 0
    %v316 = vsel %vm148, %v313, 0
    %318 = vmatpush.msra.mxu0 0.0
    %319 = vmatpush.msra.mxu0 0.0
    %320 = vmatpush.msra.mxu0 0.0
    %321 = vmatpush.msra.mxu0 0.0
    %322 = vmatpush.msra.mxu0 0.0
    %323 = vmatpush.msra.mxu0 0.0
    %324 = vmatpush.msra.mxu0 0.0
    %325 = vmatpush.msra.mxu0 0.0
    %326 = vmatpush.msra.mxu0 0.0
    %327 = vmatpush.msra.mxu0 0.0
    %328 = vmatpush.msra.mxu0 0.0
    %329 = vmatpush.msra.mxu0 0.0
    %330 = vmatpush.msra.mxu0 %v306
    %331 = vmatpush.msra.mxu0 %v305
    %332 = vmatpush.msra.mxu0 %v304
    %333 = vmatpush.msra.mxu0 %v303
    %334 = vmatmul.f32.gmra.mxu0 %v314
    %v335 = vpop.f32.mrf.mxu0
    %v336 = vadd.f32 %v307, %v335
    %337 = vmatmul.f32.gmra.mxu0 %v316
    %v338 = vpop.f32.mrf.mxu0
    %v339 = vadd.f32 %v307, %v338
    %340 = vdwg.mxu0
    %343 = vrot.lane.b32.xlu0 %v171, 96
    %v344 = vpop.permute.xlu0 %343
    %345 = vrot.lane.b32.xlu0 %v174, 96
    %v346 = vpop.permute.xlu0 %345
    %v349 = vadd.f32 %v336, %v344
    %v350 = vadd.f32 %v339, %v346
    %v351 = vxor.u32 %v349, 2147483648
    %v352 = vxor.u32 %v350, 2147483648
    %v353 = vmul.f32 %v351, 1.442695
    %v354 = vpow.pop %v353
    %v355 = vmul.f32 %v352, 1.442695
    %v356 = vpow.pop %v355
    %v357 = vadd.f32 %v354, 1.0
    %v358 = vadd.f32 %v356, 1.0
    %v359 = vrcp.pop %v357
    %v360 = vmul.f32 %v357, %v359
    %v361 = vsub.f32 1.0, %v360
    %v362 = vmul.f32 %v359, %v361
    %v363 = vadd.f32 %v359, %v362
    %vm364 = vweird.f32 %v357
    %vm365 = vweird.f32 %v359
    %vm366 = vmor %vm364, %vm365
    %v367 = vsel %vm366, %v359, %v363
    %v368 = vand.u32 2147483647, %v357
    %vm369 = vcmp.eq.f32.partialorder %v368, 8.507059e+37
    %v370 = vand.u32 %v357, 2147483648
    %v371 = vor.u32 1.1754944e-38, %v370
    %v372 = vsel %vm369, %v371, %v367
    %v373 = vmul.f32 1.0, %v372
    %v374 = vrcp.pop %v358
    %v375 = vmul.f32 %v358, %v374
    %v376 = vsub.f32 1.0, %v375
    %v377 = vmul.f32 %v374, %v376
    %v378 = vadd.f32 %v374, %v377
    %vm379 = vweird.f32 %v358
    %vm380 = vweird.f32 %v374
    %vm381 = vmor %vm379, %vm380
    %v382 = vsel %vm381, %v374, %v378
    %v383 = vand.u32 2147483647, %v358
    %vm384 = vcmp.eq.f32.partialorder %v383, 8.507059e+37
    %v385 = vand.u32 %v358, 2147483648
    %v386 = vor.u32 1.1754944e-38, %v385
    %v387 = vsel %vm384, %v386, %v382
    %v388 = vmul.f32 1.0, %v387
    %389 = vrot.lane.b32.xlu0 %v171, 32
    %v390 = vpop.permute.xlu0 %389
    %391 = vrot.lane.b32.xlu0 %v174, 32
    %v392 = vpop.permute.xlu0 %391
    %v395 = vmul.f32 %v373, %v390
    %v396 = vmul.f32 %v388, %v392
    %399 = vrot.lane.b32.xlu0 %v395, 64
    %v400 = vpop.permute.xlu0 %399
    %401 = vrot.lane.b32.xlu0 %v396, 64
    %v402 = vpop.permute.xlu0 %401
    %v405 = vadd.f32 %v336, %v400
    %v406 = vadd.f32 %v339, %v402
    %v407 = vtanh.pop %v405
    %v408 = vtanh.pop %v406
    %v409 = vsub.f32 1.0, %v373
    %v410 = vsub.f32 1.0, %v388
    %413 = vrot.lane.b32.xlu0 %v407, 96
    %v414 = vpop.permute.xlu0 %413
    %415 = vrot.lane.b32.xlu0 %v408, 96
    %v416 = vpop.permute.xlu0 %415
    %v419 = vmul.f32 %v409, %v414
    %v420 = vmul.f32 %v410, %v416
    %421 = vrot.lane.b32.xlu0 %v71, 32
    %v422 = vpop.permute.xlu0 %421
    %423 = vrot.lane.b32.xlu0 %v72, 32
    %v424 = vpop.permute.xlu0 %423
    %v427 = vmul.f32 %v373, %v422
    %v428 = vmul.f32 %v388, %v424
    %v429 = vadd.f32 %v419, %v427
    %v430 = vadd.f32 %v420, %v428
    %432 = vrot.lane.b32.xlu0 %v142, 96
    %v433 = vpop.permute.xlu0 %432
    %436 = vrot.lane.b32.xlu0 %v134, 64
    %v437 = vpop.permute.xlu0 %436
    %438 = vrot.lane.b32.xlu0 %v135, 64
    %v439 = vpop.permute.xlu0 %438
    %440 = vrot.lane.b32.xlu0 %v74, 32
    %v441 = vpop.permute.xlu0 %440
    %442 = vrot.lane.b32.xlu0 %v75, 32
    %v443 = vpop.permute.xlu0 %442
    %444 = vrot.lane.b32.xlu0 %v76, 32
    %v445 = vpop.permute.xlu0 %444
    %446 = vrot.lane.b32.xlu0 %v77, 32
    %v447 = vpop.permute.xlu0 %446
    %v453 = vsel %vm148, %v300, 0
    %v455 = vsel %vm148, %v433, 0
    %v457 = vsel %vm148, %v437, 0
    %v459 = vsel %vm148, %v439, 0
    %461 = vmatpush.msra.mxu0 0.0
    %462 = vmatpush.msra.mxu0 0.0
    %463 = vmatpush.msra.mxu0 0.0
    %464 = vmatpush.msra.mxu0 0.0
    %465 = vmatpush.msra.mxu0 0.0
    %466 = vmatpush.msra.mxu0 0.0
    %467 = vmatpush.msra.mxu0 0.0
    %468 = vmatpush.msra.mxu0 0.0
    %469 = vmatpush.msra.mxu0 0.0
    %470 = vmatpush.msra.mxu0 0.0
    %471 = vmatpush.msra.mxu0 0.0
    %472 = vmatpush.msra.mxu0 0.0
    %473 = vmatpush.msra.mxu0 %v447
    %474 = vmatpush.msra.mxu0 %v445
    %475 = vmatpush.msra.mxu0 %v443
    %476 = vmatpush.msra.mxu0 %v441
    %477 = vmatmul.f32.gmra.mxu0 %v453
    %v478 = vpop.f32.mrf.mxu0
    %v479 = vadd.f32 0.0, %v478
    %480 = vmatmul.f32.gmra.mxu0 %v455
    %v481 = vpop.f32.mrf.mxu0
    %v482 = vadd.f32 0.0, %v481
    %483 = vmatmul.f32.gmra.mxu0 %v457
    %v484 = vpop.f32.mrf.mxu0
    %v485 = vadd.f32 0.0, %v484
    %486 = vmatmul.f32.gmra.mxu0 %v459
    %v487 = vpop.f32.mrf.mxu0
    %v488 = vadd.f32 0.0, %v487
    %489 = vdwg.mxu0
    %491 = vrot.lane.b32.xlu0 %v482, 126
    %v492 = vpop.permute.xlu0 %491
    %v494 = vadd.f32 %v479, %v492
    %496 = vrot.lane.b32.xlu0 %v117, 34
    %v497 = vpop.permute.xlu0 %496
    %v499 = vadd.f32 %v494, %v497
    %v500 = vxor.u32 %v499, 2147483648
    %v501 = vmul.f32 %v500, 1.442695
    %v502 = vpow.pop %v501
    %v503 = vadd.f32 %v502, 1.0
    %v504 = vrcp.pop %v503
    %v505 = vmul.f32 %v503, %v504
    %v506 = vsub.f32 1.0, %v505
    %v507 = vmul.f32 %v504, %v506
    %v508 = vadd.f32 %v504, %v507
    %vm509 = vweird.f32 %v503
    %vm510 = vweird.f32 %v504
    %vm511 = vmor %vm509, %vm510
    %v512 = vsel %vm511, %v504, %v508
    %v513 = vand.u32 2147483647, %v503
    %vm514 = vcmp.eq.f32.partialorder %v513, 8.507059e+37
    %v515 = vand.u32 %v503, 2147483648
    %v516 = vor.u32 1.1754944e-38, %v515
    %v517 = vsel %vm514, %v516, %v512
    %v518 = vmul.f32 1.0, %v517
    %521 = vrot.lane.b32.xlu0 %v485, 96
    %v522 = vpop.permute.xlu0 %521
    %523 = vrot.lane.b32.xlu0 %v488, 96
    %v524 = vpop.permute.xlu0 %523
    %v527 = vadd.f32 %v336, %v522
    %v528 = vadd.f32 %v339, %v524
    %v529 = vxor.u32 %v527, 2147483648
    %v530 = vxor.u32 %v528, 2147483648
    %v531 = vmul.f32 %v529, 1.442695
    %v532 = vpow.pop %v531
    %v533 = vmul.f32 %v530, 1.442695
    %v534 = vpow.pop %v533
    %v535 = vadd.f32 %v532, 1.0
    %v536 = vadd.f32 %v534, 1.0
    %v537 = vrcp.pop %v535
    %v538 = vmul.f32 %v535, %v537
    %v539 = vsub.f32 1.0, %v538
    %v540 = vmul.f32 %v537, %v539
    %v541 = vadd.f32 %v537, %v540
    %vm542 = vweird.f32 %v535
    %vm543 = vweird.f32 %v537
    %vm544 = vmor %vm542, %vm543
    %v545 = vsel %vm544, %v537, %v541
    %v546 = vand.u32 2147483647, %v535
    %vm547 = vcmp.eq.f32.partialorder %v546, 8.507059e+37
    %v548 = vand.u32 %v535, 2147483648
    %v549 = vor.u32 1.1754944e-38, %v548
    %v550 = vsel %vm547, %v549, %v545
    %v551 = vmul.f32 1.0, %v550
    %v552 = vrcp.pop %v536
    %v553 = vmul.f32 %v536, %v552
    %v554 = vsub.f32 1.0, %v553
    %v555 = vmul.f32 %v552, %v554
    %v556 = vadd.f32 %v552, %v555
    %vm557 = vweird.f32 %v536
    %vm558 = vweird.f32 %v552
    %vm559 = vmor %vm557, %vm558
    %v560 = vsel %vm559, %v552, %v556
    %v561 = vand.u32 2147483647, %v536
    %vm562 = vcmp.eq.f32.partialorder %v561, 8.507059e+37
    %v563 = vand.u32 %v536, 2147483648
    %v564 = vor.u32 1.1754944e-38, %v563
    %v565 = vsel %vm562, %v564, %v560
    %v566 = vmul.f32 1.0, %v565
    %567 = vst [vmem:[#allocation8] sm:$0xff] 0.0
    %568 = vst [vmem:[#allocation8 + $0x8] sm:$0xff] 0.0
    %571 = vrot.lane.b32.xlu0 %v429, 96
    %v572 = vpop.permute.xlu0 %571
    %573 = vrot.lane.b32.xlu0 %v430, 96
    %v574 = vpop.permute.xlu0 %573
    %577 = vst.msk [vmem:[#allocation8] sm:$0xff] %vm148, %v572
    %578 = vst.msk [vmem:[#allocation8 + $0x8] sm:$0xff] %vm148, %v574
    %581 = vrot.lane.b32.xlu0 %v551, 64
    %v582 = vpop.permute.xlu0 %581
    %583 = vrot.lane.b32.xlu0 %v566, 64
    %v584 = vpop.permute.xlu0 %583
    %vm587 = vcmask 277760
    %588 = vst.msk [vmem:[#allocation8] sm:$0xff] %vm587, %v582
    %589 = vst.msk [vmem:[#allocation8 + $0x8] sm:$0xff] %vm587, %v584
    %591 = vrot.lane.b32.xlu0 %v518, 32
    %v592 = vpop.permute.xlu0 %591
    %vm594 = vcmask 294160
    %595 = vst.msk [vmem:[#allocation8] sm:$0xff] %vm594, %v592
    // Predicated region
    $region38: #{tpu_custom_call.1} parent=1 // pred_check
      _
    $region39: #{tpu_custom_call.1} parent=1 // pred_check_branch
      %597 = sbr.rel (0) target = $region41
    $region40: #{tpu_custom_call.1} parent=1 // pred_region
      %599 = vsyncadd [#allocation4], 0
      %s600 = sshll.u32 [#allocation8], 4
      %s601 = int_to_ptr.vmem [resolvable:$true] %s600
      %s602 = sshll.u32 %s6, 4
      %s603 = int_to_ptr.hbm [resolvable:$true] %s602
      %608 = dma.vmem_to_hbm [thread:$0]  %s601, 256, %s603, [#allocation4], 128, 128, 8
    $region41: #{tpu_custom_call.1} parent=1 // pred_fallthru
      _
    // Predicated region
    $region42: #{tpu_custom_call.1} parent=1 // pred_check
      _
    $region43: #{tpu_custom_call.1} parent=1 // pred_check_branch
      %610 = sbr.rel (0) target = $region45
    $region44: #{tpu_custom_call.1} parent=1 // pred_region
      %612 = dma.done [#allocation4], 256
    $region45: #{tpu_custom_call.1} parent=1 // pred_fallthru
      _
    %613 = vsyncpa [#allocation3], 1
    %614 = vsyncpa [#allocation6], 1
    %615 = vsyncpa [#allocation4], 1

</llo_original>
